<compile_context>
chip_gen: v5e
topology: v5e:2x2
jax: 0.10.0
libtpu: 0.0.40
codegen_flags: <defaults>
</compile_context>

<pallas_src>
import jax
import jax.numpy as jnp
from jax.experimental import pallas as pl
from jax.experimental.pallas import tpu as pltpu


def _make_subpixel_kernel(c_in, r2):
    def kernel(x_ref, w_ref, b_ref, a_ref, o_ref):
        # x_ref: (C_in, HW) VMEM (HW on the lane axis)
        # w_ref: (R2*C_in,) SMEM   (w_ref[o*C_in + c] = weight[o, c, 0, 0])
        # b_ref: (R2,) SMEM
        # a_ref: (2,) SMEM         (alpha1, alpha2)
        # o_ref: (R2, HW) VMEM
        x = x_ref[...].astype(jnp.float32)
        a1 = a_ref[0]
        a2 = a_ref[1]
        for o in range(r2):
            # 1x1 conv for output channel o: unrolled VPU FMAs (no MXU round-trip).
            acc = x[0:1, :] * w_ref[o * c_in] + b_ref[o]
            for c in range(1, c_in):
                acc = acc + x[c:c + 1, :] * w_ref[o * c_in + c]
            # PReLU #1 (pre-shuffle) and PReLU #2 (post-shuffle; scalar slope
            # commutes with the permutation, so fuse it here). Kept as two
            # selects so correctness holds for any alpha sign.
            acc = jnp.where(acc >= 0, acc, a1 * acc)
            acc = jnp.where(acc >= 0, acc, a2 * acc)
            o_ref[o:o + 1, :] = acc.astype(o_ref.dtype)

    return kernel


def subpixel_forward(x, weight, bias, alpha1, alpha2, upscale_factor):
    """x: (N, C_in, H, W) NCHW. Returns (N, 1, H*r, W*r), matching PyTorch SubPixelLayer."""
    N, C_in, H, W = x.shape
    r = upscale_factor
    R2 = r * r
    HW = H * W
    assert weight.shape == (R2, C_in, 1, 1)

    # Free reshape of NCHW: channels on sublanes, spatial positions on lanes.
    x3 = x.reshape(N, C_in, HW)

    w_flat = weight.reshape(R2 * C_in).astype(jnp.float32)   # [o*C_in + c] = w[o, c]
    b_vec = bias.reshape(R2).astype(jnp.float32)
    a_vec = jnp.stack(
        [jnp.asarray(alpha1).reshape(()), jnp.asarray(alpha2).reshape(())]
    ).astype(jnp.float32)

    kernel = _make_subpixel_kernel(C_in, R2)

    y3 = pl.pallas_call(
        kernel,
        out_shape=jax.ShapeDtypeStruct((N, R2, HW), x.dtype),
        grid=(N,),
        in_specs=[
            # Lane-dense activation slab for one batch element.
            pl.BlockSpec((None, C_in, HW), lambda n: (n, 0, 0)),
            # Tiny parameters live in SMEM (scalar path).
            pl.BlockSpec(memory_space=pltpu.MemorySpace.SMEM),
            pl.BlockSpec(memory_space=pltpu.MemorySpace.SMEM),
            pl.BlockSpec(memory_space=pltpu.MemorySpace.SMEM),
        ],
        out_specs=pl.BlockSpec((None, R2, HW), lambda n: (n, 0, 0)),
        compiler_params=pltpu.CompilerParams(dimension_semantics=("parallel",)),
    )(x3, w_flat, b_vec, a_vec)

    # PixelShuffle (pure index permutation, done as free JAX glue):
    # y3[n, i*r + j, h*W + w] -> out[n, 0, h*r + i, w*r + j]
    y = y3.reshape(N, r, r, H, W)
    y = jnp.transpose(y, (0, 3, 1, 4, 2)).reshape(N, 1, H * r, W * r)
    return y


def _reference_forward(x, weight, bias, alpha1, alpha2, r):
    # Plain-JAX reference matching the PyTorch module (for correctness check).
    N, C_in, H, W = x.shape
    R2 = r * r
    w = weight.reshape(R2, C_in)
    y = jnp.einsum("nchw,oc->nohw", x, w) + bias.reshape(1, R2, 1, 1)
    y = jnp.where(y >= 0, y, alpha1 * y)
    # pixel shuffle
    y = y.reshape(N, 1, r, r, H, W)
    y = jnp.transpose(y, (0, 1, 4, 2, 5, 3)).reshape(N, 1, H * r, W * r)
    y = jnp.where(y >= 0, y, alpha2 * y)
    return y


if __name__ == "__main__":
    key = jax.random.PRNGKey(0)
    k_x, k_w, k_b = jax.random.split(key, 3)

    N, C_in, H, W = 2, 4, 16, 16
    upscale_factor = 2
    R2 = upscale_factor ** 2

    x = jax.random.normal(k_x, (N, C_in, H, W), dtype=jnp.float32)
    # Deterministic synthetic parameters (Conv2d weight (r^2, C_in, 1, 1), bias (r^2,))
    weight = jax.random.normal(k_w, (R2, C_in, 1, 1), dtype=jnp.float32) * 0.1
    bias = jax.random.normal(k_b, (R2,), dtype=jnp.float32) * 0.05
    alpha1 = jnp.array(0.25, dtype=jnp.float32)  # nn.PReLU() default init
    alpha2 = jnp.array(0.25, dtype=jnp.float32)

    out = subpixel_forward(x, weight, bias, alpha1, alpha2, upscale_factor)
    out = jax.block_until_ready(out)

    ref = _reference_forward(x, weight, bias, alpha1, alpha2, upscale_factor)
    assert out.shape == (N, 1, H * upscale_factor, W * upscale_factor)
    assert jnp.allclose(out, ref, atol=1e-5, rtol=1e-5)

    print("KERNEL_OK")
</pallas_src>

<mosaic_0001>
module attributes {stable_mosaic.version = 11 : i64} {
  func.func @kernel(%arg0: i32, %arg1: memref<1x4x256xf32, #tpu.memory_space<vmem>>, %arg2: memref<16xf32, #tpu.memory_space<smem>>, %arg3: memref<4xf32, #tpu.memory_space<smem>>, %arg4: memref<2xf32, #tpu.memory_space<smem>>, %arg5: memref<1x4x256xf32, #tpu.memory_space<vmem>>) attributes {dimension_semantics = [#tpu.dimension_semantics<parallel>], iteration_bounds = array<i64: 2>, scalar_prefetch = 0 : i64, scratch_operands = 0 : i64, tpu.core_type = #tpu.core_type<tc>, window_params = [{transform_indices = @transform_0, window_bounds = array<i64: 1, 4, 256>}, {transform_indices = @transform_1, window_bounds = array<i64: 16>}, {transform_indices = @transform_2, window_bounds = array<i64: 4>}, {transform_indices = @transform_3, window_bounds = array<i64: 2>}, {transform_indices = @transform_4, window_bounds = array<i64: 1, 4, 256>}]} {
    %c0 = arith.constant 0 : index
    %c0_0 = arith.constant 0 : index
    %c0_1 = arith.constant 0 : index
    %0 = vector.load %arg1[%c0, %c0_0, %c0_1] : memref<1x4x256xf32, #tpu.memory_space<vmem>>, vector<1x4x256xf32>
    %1 = vector.shape_cast %0 : vector<1x4x256xf32> to vector<4x256xf32>
    %c0_2 = arith.constant 0 : index
    %2 = memref.load %arg4[%c0_2] : memref<2xf32, #tpu.memory_space<smem>>
    %c1 = arith.constant 1 : index
    %3 = memref.load %arg4[%c1] : memref<2xf32, #tpu.memory_space<smem>>
    %4 = vector.extract_strided_slice %1 {offsets = [0, 0], sizes = [1, 256], strides = [1, 1]} : vector<4x256xf32> to vector<1x256xf32>
    %c0_3 = arith.constant 0 : index
    %5 = memref.load %arg2[%c0_3] : memref<16xf32, #tpu.memory_space<smem>>
    %6 = vector.broadcast %5 : f32 to vector<1x256xf32>
    %7 = arith.mulf %4, %6 : vector<1x256xf32>
    %c0_4 = arith.constant 0 : index
    %8 = memref.load %arg3[%c0_4] : memref<4xf32, #tpu.memory_space<smem>>
    %9 = vector.broadcast %8 : f32 to vector<1x256xf32>
    %10 = arith.addf %7, %9 : vector<1x256xf32>
    %11 = vector.extract_strided_slice %1 {offsets = [1, 0], sizes = [1, 256], strides = [1, 1]} : vector<4x256xf32> to vector<1x256xf32>
    %c1_5 = arith.constant 1 : index
    %12 = memref.load %arg2[%c1_5] : memref<16xf32, #tpu.memory_space<smem>>
    %13 = vector.broadcast %12 : f32 to vector<1x256xf32>
    %14 = arith.mulf %11, %13 : vector<1x256xf32>
    %15 = arith.addf %10, %14 : vector<1x256xf32>
    %16 = vector.extract_strided_slice %1 {offsets = [2, 0], sizes = [1, 256], strides = [1, 1]} : vector<4x256xf32> to vector<1x256xf32>
    %c2 = arith.constant 2 : index
    %17 = memref.load %arg2[%c2] : memref<16xf32, #tpu.memory_space<smem>>
    %18 = vector.broadcast %17 : f32 to vector<1x256xf32>
    %19 = arith.mulf %16, %18 : vector<1x256xf32>
    %20 = arith.addf %15, %19 : vector<1x256xf32>
    %21 = vector.extract_strided_slice %1 {offsets = [3, 0], sizes = [1, 256], strides = [1, 1]} : vector<4x256xf32> to vector<1x256xf32>
    %c3 = arith.constant 3 : index
    %22 = memref.load %arg2[%c3] : memref<16xf32, #tpu.memory_space<smem>>
    %23 = vector.broadcast %22 : f32 to vector<1x256xf32>
    %24 = arith.mulf %21, %23 : vector<1x256xf32>
    %25 = arith.addf %20, %24 : vector<1x256xf32>
    %cst = arith.constant 0.000000e+00 : f32
    %26 = vector.broadcast %cst : f32 to vector<1x256xf32>
    %27 = arith.cmpf oge, %25, %26 : vector<1x256xf32>
    %28 = vector.broadcast %2 : f32 to vector<1x256xf32>
    %29 = arith.mulf %28, %25 : vector<1x256xf32>
    %30 = arith.select %27, %25, %29 : vector<1x256xi1>, vector<1x256xf32>
    %cst_6 = arith.constant 0.000000e+00 : f32
    %31 = vector.broadcast %cst_6 : f32 to vector<1x256xf32>
    %32 = arith.cmpf oge, %30, %31 : vector<1x256xf32>
    %33 = vector.broadcast %3 : f32 to vector<1x256xf32>
    %34 = arith.mulf %33, %30 : vector<1x256xf32>
    %35 = arith.select %32, %30, %34 : vector<1x256xi1>, vector<1x256xf32>
    %c0_7 = arith.constant 0 : index
    %c0_8 = arith.constant 0 : index
    %c0_9 = arith.constant 0 : index
    %36 = vector.load %arg5[%c0_7, %c0_8, %c0_9] : memref<1x4x256xf32, #tpu.memory_space<vmem>>, vector<1x1x256xf32>
    %37 = vector.shape_cast %36 : vector<1x1x256xf32> to vector<1x256xf32>
    %38 = vector.shape_cast %35 : vector<1x256xf32> to vector<1x1x256xf32>
    tpu.vector_store %arg5[%c0_7, %c0_8, %c0_9], %38 {strides = array<i32>} : memref<1x4x256xf32, #tpu.memory_space<vmem>>, vector<1x1x256xf32>,
    %39 = vector.extract_strided_slice %1 {offsets = [0, 0], sizes = [1, 256], strides = [1, 1]} : vector<4x256xf32> to vector<1x256xf32>
    %c4 = arith.constant 4 : index
    %40 = memref.load %arg2[%c4] : memref<16xf32, #tpu.memory_space<smem>>
    %41 = vector.broadcast %40 : f32 to vector<1x256xf32>
    %42 = arith.mulf %39, %41 : vector<1x256xf32>
    %c1_10 = arith.constant 1 : index
    %43 = memref.load %arg3[%c1_10] : memref<4xf32, #tpu.memory_space<smem>>
    %44 = vector.broadcast %43 : f32 to vector<1x256xf32>
    %45 = arith.addf %42, %44 : vector<1x256xf32>
    %46 = vector.extract_strided_slice %1 {offsets = [1, 0], sizes = [1, 256], strides = [1, 1]} : vector<4x256xf32> to vector<1x256xf32>
    %c5 = arith.constant 5 : index
    %47 = memref.load %arg2[%c5] : memref<16xf32, #tpu.memory_space<smem>>
    %48 = vector.broadcast %47 : f32 to vector<1x256xf32>
    %49 = arith.mulf %46, %48 : vector<1x256xf32>
    %50 = arith.addf %45, %49 : vector<1x256xf32>
    %51 = vector.extract_strided_slice %1 {offsets = [2, 0], sizes = [1, 256], strides = [1, 1]} : vector<4x256xf32> to vector<1x256xf32>
    %c6 = arith.constant 6 : index
    %52 = memref.load %arg2[%c6] : memref<16xf32, #tpu.memory_space<smem>>
    %53 = vector.broadcast %52 : f32 to vector<1x256xf32>
    %54 = arith.mulf %51, %53 : vector<1x256xf32>
    %55 = arith.addf %50, %54 : vector<1x256xf32>
    %56 = vector.extract_strided_slice %1 {offsets = [3, 0], sizes = [1, 256], strides = [1, 1]} : vector<4x256xf32> to vector<1x256xf32>
    %c7 = arith.constant 7 : index
    %57 = memref.load %arg2[%c7] : memref<16xf32, #tpu.memory_space<smem>>
    %58 = vector.broadcast %57 : f32 to vector<1x256xf32>
    %59 = arith.mulf %56, %58 : vector<1x256xf32>
    %60 = arith.addf %55, %59 : vector<1x256xf32>
    %cst_11 = arith.constant 0.000000e+00 : f32
    %61 = vector.broadcast %cst_11 : f32 to vector<1x256xf32>
    %62 = arith.cmpf oge, %60, %61 : vector<1x256xf32>
    %63 = vector.broadcast %2 : f32 to vector<1x256xf32>
    %64 = arith.mulf %63, %60 : vector<1x256xf32>
    %65 = arith.select %62, %60, %64 : vector<1x256xi1>, vector<1x256xf32>
    %cst_12 = arith.constant 0.000000e+00 : f32
    %66 = vector.broadcast %cst_12 : f32 to vector<1x256xf32>
    %67 = arith.cmpf oge, %65, %66 : vector<1x256xf32>
    %68 = vector.broadcast %3 : f32 to vector<1x256xf32>
    %69 = arith.mulf %68, %65 : vector<1x256xf32>
    %70 = arith.select %67, %65, %69 : vector<1x256xi1>, vector<1x256xf32>
    %c0_13 = arith.constant 0 : index
    %c1_14 = arith.constant 1 : index
    %c0_15 = arith.constant 0 : index
    %71 = vector.load %arg5[%c0_13, %c1_14, %c0_15] : memref<1x4x256xf32, #tpu.memory_space<vmem>>, vector<1x1x256xf32>
    %72 = vector.shape_cast %71 : vector<1x1x256xf32> to vector<1x256xf32>
    %73 = vector.shape_cast %70 : vector<1x256xf32> to vector<1x1x256xf32>
    tpu.vector_store %arg5[%c0_13, %c1_14, %c0_15], %73 {strides = array<i32>} : memref<1x4x256xf32, #tpu.memory_space<vmem>>, vector<1x1x256xf32>,
    %74 = vector.extract_strided_slice %1 {offsets = [0, 0], sizes = [1, 256], strides = [1, 1]} : vector<4x256xf32> to vector<1x256xf32>
    %c8 = arith.constant 8 : index
    %75 = memref.load %arg2[%c8] : memref<16xf32, #tpu.memory_space<smem>>
    %76 = vector.broadcast %75 : f32 to vector<1x256xf32>
    %77 = arith.mulf %74, %76 : vector<1x256xf32>
    %c2_16 = arith.constant 2 : index
    %78 = memref.load %arg3[%c2_16] : memref<4xf32, #tpu.memory_space<smem>>
    %79 = vector.broadcast %78 : f32 to vector<1x256xf32>
    %80 = arith.addf %77, %79 : vector<1x256xf32>
    %81 = vector.extract_strided_slice %1 {offsets = [1, 0], sizes = [1, 256], strides = [1, 1]} : vector<4x256xf32> to vector<1x256xf32>
    %c9 = arith.constant 9 : index
    %82 = memref.load %arg2[%c9] : memref<16xf32, #tpu.memory_space<smem>>
    %83 = vector.broadcast %82 : f32 to vector<1x256xf32>
    %84 = arith.mulf %81, %83 : vector<1x256xf32>
    %85 = arith.addf %80, %84 : vector<1x256xf32>
    %86 = vector.extract_strided_slice %1 {offsets = [2, 0], sizes = [1, 256], strides = [1, 1]} : vector<4x256xf32> to vector<1x256xf32>
    %c10 = arith.constant 10 : index
    %87 = memref.load %arg2[%c10] : memref<16xf32, #tpu.memory_space<smem>>
    %88 = vector.broadcast %87 : f32 to vector<1x256xf32>
    %89 = arith.mulf %86, %88 : vector<1x256xf32>
    %90 = arith.addf %85, %89 : vector<1x256xf32>
    %91 = vector.extract_strided_slice %1 {offsets = [3, 0], sizes = [1, 256], strides = [1, 1]} : vector<4x256xf32> to vector<1x256xf32>
    %c11 = arith.constant 11 : index
    %92 = memref.load %arg2[%c11] : memref<16xf32, #tpu.memory_space<smem>>
    %93 = vector.broadcast %92 : f32 to vector<1x256xf32>
    %94 = arith.mulf %91, %93 : vector<1x256xf32>
    %95 = arith.addf %90, %94 : vector<1x256xf32>
    %cst_17 = arith.constant 0.000000e+00 : f32
    %96 = vector.broadcast %cst_17 : f32 to vector<1x256xf32>
    %97 = arith.cmpf oge, %95, %96 : vector<1x256xf32>
    %98 = vector.broadcast %2 : f32 to vector<1x256xf32>
    %99 = arith.mulf %98, %95 : vector<1x256xf32>
    %100 = arith.select %97, %95, %99 : vector<1x256xi1>, vector<1x256xf32>
    %cst_18 = arith.constant 0.000000e+00 : f32
    %101 = vector.broadcast %cst_18 : f32 to vector<1x256xf32>
    %102 = arith.cmpf oge, %100, %101 : vector<1x256xf32>
    %103 = vector.broadcast %3 : f32 to vector<1x256xf32>
    %104 = arith.mulf %103, %100 : vector<1x256xf32>
    %105 = arith.select %102, %100, %104 : vector<1x256xi1>, vector<1x256xf32>
    %c0_19 = arith.constant 0 : index
    %c2_20 = arith.constant 2 : index
    %c0_21 = arith.constant 0 : index
    %106 = vector.load %arg5[%c0_19, %c2_20, %c0_21] : memref<1x4x256xf32, #tpu.memory_space<vmem>>, vector<1x1x256xf32>
    %107 = vector.shape_cast %106 : vector<1x1x256xf32> to vector<1x256xf32>
    %108 = vector.shape_cast %105 : vector<1x256xf32> to vector<1x1x256xf32>
    tpu.vector_store %arg5[%c0_19, %c2_20, %c0_21], %108 {strides = array<i32>} : memref<1x4x256xf32, #tpu.memory_space<vmem>>, vector<1x1x256xf32>,
    %109 = vector.extract_strided_slice %1 {offsets = [0, 0], sizes = [1, 256], strides = [1, 1]} : vector<4x256xf32> to vector<1x256xf32>
    %c12 = arith.constant 12 : index
    %110 = memref.load %arg2[%c12] : memref<16xf32, #tpu.memory_space<smem>>
    %111 = vector.broadcast %110 : f32 to vector<1x256xf32>
    %112 = arith.mulf %109, %111 : vector<1x256xf32>
    %c3_22 = arith.constant 3 : index
    %113 = memref.load %arg3[%c3_22] : memref<4xf32, #tpu.memory_space<smem>>
    %114 = vector.broadcast %113 : f32 to vector<1x256xf32>
    %115 = arith.addf %112, %114 : vector<1x256xf32>
    %116 = vector.extract_strided_slice %1 {offsets = [1, 0], sizes = [1, 256], strides = [1, 1]} : vector<4x256xf32> to vector<1x256xf32>
    %c13 = arith.constant 13 : index
    %117 = memref.load %arg2[%c13] : memref<16xf32, #tpu.memory_space<smem>>
    %118 = vector.broadcast %117 : f32 to vector<1x256xf32>
    %119 = arith.mulf %116, %118 : vector<1x256xf32>
    %120 = arith.addf %115, %119 : vector<1x256xf32>
    %121 = vector.extract_strided_slice %1 {offsets = [2, 0], sizes = [1, 256], strides = [1, 1]} : vector<4x256xf32> to vector<1x256xf32>
    %c14 = arith.constant 14 : index
    %122 = memref.load %arg2[%c14] : memref<16xf32, #tpu.memory_space<smem>>
    %123 = vector.broadcast %122 : f32 to vector<1x256xf32>
    %124 = arith.mulf %121, %123 : vector<1x256xf32>
    %125 = arith.addf %120, %124 : vector<1x256xf32>
    %126 = vector.extract_strided_slice %1 {offsets = [3, 0], sizes = [1, 256], strides = [1, 1]} : vector<4x256xf32> to vector<1x256xf32>
    %c15 = arith.constant 15 : index
    %127 = memref.load %arg2[%c15] : memref<16xf32, #tpu.memory_space<smem>>
    %128 = vector.broadcast %127 : f32 to vector<1x256xf32>
    %129 = arith.mulf %126, %128 : vector<1x256xf32>
    %130 = arith.addf %125, %129 : vector<1x256xf32>
    %cst_23 = arith.constant 0.000000e+00 : f32
    %131 = vector.broadcast %cst_23 : f32 to vector<1x256xf32>
    %132 = arith.cmpf oge, %130, %131 : vector<1x256xf32>
    %133 = vector.broadcast %2 : f32 to vector<1x256xf32>
    %134 = arith.mulf %133, %130 : vector<1x256xf32>
    %135 = arith.select %132, %130, %134 : vector<1x256xi1>, vector<1x256xf32>
    %cst_24 = arith.constant 0.000000e+00 : f32
    %136 = vector.broadcast %cst_24 : f32 to vector<1x256xf32>
    %137 = arith.cmpf oge, %135, %136 : vector<1x256xf32>
    %138 = vector.broadcast %3 : f32 to vector<1x256xf32>
    %139 = arith.mulf %138, %135 : vector<1x256xf32>
    %140 = arith.select %137, %135, %139 : vector<1x256xi1>, vector<1x256xf32>
    %c0_25 = arith.constant 0 : index
    %c3_26 = arith.constant 3 : index
    %c0_27 = arith.constant 0 : index
    %141 = vector.load %arg5[%c0_25, %c3_26, %c0_27] : memref<1x4x256xf32, #tpu.memory_space<vmem>>, vector<1x1x256xf32>
    %142 = vector.shape_cast %141 : vector<1x1x256xf32> to vector<1x256xf32>
    %143 = vector.shape_cast %140 : vector<1x256xf32> to vector<1x1x256xf32>
    tpu.vector_store %arg5[%c0_25, %c3_26, %c0_27], %143 {strides = array<i32>} : memref<1x4x256xf32, #tpu.memory_space<vmem>>, vector<1x1x256xf32>,
    return
  }
  func.func @transform_0(%arg0: i32) -> (i32, i32, i32) {
    %c0_i32 = arith.constant 0 : i32
    %c0_i32_0 = arith.constant 0 : i32
    %c0_i32_1 = arith.constant 0 : i32
    return %arg0, %c0_i32, %c0_i32_0 : i32, i32, i32
  }
  func.func @transform_1(%arg0: i32) -> i32 {
    %c0_i32 = arith.constant 0 : i32
    %c0_i32_0 = arith.constant 0 : i32
    return %c0_i32 : i32
  }
  func.func @transform_2(%arg0: i32) -> i32 {
    %c0_i32 = arith.constant 0 : i32
    %c0_i32_0 = arith.constant 0 : i32
    return %c0_i32 : i32
  }
  func.func @transform_3(%arg0: i32) -> i32 {
    %c0_i32 = arith.constant 0 : i32
    %c0_i32_0 = arith.constant 0 : i32
    return %c0_i32 : i32
  }
  func.func @transform_4(%arg0: i32) -> (i32, i32, i32) {
    %c0_i32 = arith.constant 0 : i32
    %c0_i32_0 = arith.constant 0 : i32
    %c0_i32_1 = arith.constant 0 : i32
    return %arg0, %c0_i32, %c0_i32_0 : i32, i32, i32
  }
}

</mosaic_0001>

<llo_original>
// kernel: tpu_custom_call.1
$region0: #{tpu_custom_call.1}
  #allocation0 [shape = 'u32[]', space=smem, size = 0x4, offset = 0x4, fixed_abs, tag = 'smem constant byte address 0x4 - core index']
  #allocation1 [shape = 'u32[72,128]{1,0:T(1,128)}', space=vmem, size = 0x9000, scoped, tag = 'internal scratch']
  %s0 = inlined_call_operand.hbm [shape: f32[2,4,256], index: 0, kind: input, shape index: {}]
  %s1 = inlined_call_operand.hbm [shape: f32[16], index: 1, kind: input, shape index: {}]
  %s2 = inlined_call_operand.vmem [shape: f32[4], index: 2, kind: input, shape index: {}]
  %s3 = inlined_call_operand.vmem [shape: f32[2], index: 3, kind: input, shape index: {}]
  %s4 = inlined_call_operand.hbm [shape: f32[2,4,256], index: 4, kind: output, shape index: {}]
  %s5 = sld [smem:[#allocation0]]
  $region65: #{tpu_custom_call.1} parent=0
    _
  %s7 = ssub.s32 1, %s5
  %s8 = scalar_select 0, %s7, %s5
  $region1: #{tpu_custom_call.1} parent=0
    #allocation2 [shape = 'u8[8192]{0}', space=vmem, size = 0x2000, scoped, tag = 'input window, operand 0']
    #allocation3 [shape = 's32[2]{0}', space=sflag, size = 0x8, scoped, tag = 'scoped memory for tpu_custom_call.1']
    #allocation4 [shape = 's32[2]{0}', space=sflag, size = 0x8, scoped, tag = 'scoped memory for tpu_custom_call.1']
    #allocation5 [shape = 's32[2]{0}', space=sflag, size = 0x8, scoped, tag = 'scoped memory for tpu_custom_call.1']
    #allocation6 [shape = 's32[2]{0}', space=sflag, size = 0x8, scoped, tag = 'scoped memory for tpu_custom_call.1']
    #allocation7 [shape = 'u8[512]{0}', space=smem, size = 0x200, scoped, tag = 'input window, operand 1, single buffered']
    #allocation8 [shape = 'u8[512]{0}', space=smem, size = 0x200, scoped, tag = 'input window, operand 2, single buffered']
    #allocation9 [shape = 'u8[512]{0}', space=smem, size = 0x200, scoped, tag = 'input window, operand 3, single buffered']
    #allocation10 [shape = 's32[1]{0}', space=sflag, size = 0x4, scoped, tag = 'scoped memory for tpu_custom_call.1']
    #allocation11 [shape = 'u8[8192]{0}', space=vmem, size = 0x2000, scoped, tag = 'output window, operand 0']
    %9 = vsyncpa [#allocation3], 0
    %s10 = scalar_lea.sflag [#allocation3], 1
    %11 = vsyncpa %s10, 0
    %12 = vsyncpa [#allocation5], 0
    %13 = vsyncpa [#allocation6], 0
    %14 = vsyncpa [#allocation10], 0
    %15 = vsyncpa [#allocation4], 0
    %s16 = scalar_lea.sflag [#allocation4], 1
    %17 = vsyncpa %s16, 0
    loop: start=0, step=1, limit=4
    $region2: #{tpu_custom_call.1} parent=1 // loop_pre_header
      _
    $region3: #{tpu_custom_call.1} parent=1 // loop_header
      %s19 = sphi 0, %s23
      %p20 = scmp.ge.s32.totalorder %s19, 4
      %s29 = sphi 0, %s31
      %s32 = sphi 0, %s29
      %s33 = sphi 0, %s32
      %s49 = sphi 0, %s33
      %s53 = sphi 0, %s53
      %s55 = sphi 0, %s53
      %s56 = sphi 0, %s55
      %s70 = sphi 0, %s56
      %s74 = sphi 0, %s74
      %s76 = sphi 0, %s74
      %s77 = sphi 0, %s76
      %s91 = sphi 0, %s77
      %s95 = sphi 0, %s95
      %s97 = sphi 0, %s95
      %s98 = sphi 0, %s97
      %s112 = sphi 0, %s98
      %s118 = sphi 0, %s120
      %s121 = sphi 0, %s118
      %s122 = sphi 0, %s121
      %s138 = sphi 0, %s122
    $region4: #{tpu_custom_call.1} parent=1 // loop_header_branch
      %22 = sbr.rel (%p20) target = $region8
    $region5: #{tpu_custom_call.1} parent=1 // loop_body
      %s24 = ssub.s32 %s19, 1
      %s25 = ssub.s32 %s19, 2
      %s26 = sadd.s32 %s19, 1
      %s27 = ssub.s32 %s19, %s26
      %p28 = scmp.eq.s32.totalorder %s27, 0
      %s30 = sadd.s32 %s29, 1
      %s31 = scalar_select %p28, %s29, %s30
      %p34 = pneg %p28
      %p35 = scmp.eq.s32.totalorder %s19, 1
      %p36 = por %p34, %p35
      %p37 = scmp.ne.s32.totalorder %s29, %s32
      %p38 = scmp.eq.s32.totalorder %s19, 0
      %p39 = por %p37, %p38
      %p40 = scmp.ne.s32.totalorder %s29, %s32
      %p41 = scmp.eq.s32.totalorder %s24, 1
      %p42 = por %p40, %p41
      %p43 = scmp.ne.s32.totalorder %s32, %s33
      %p44 = scmp.eq.s32.totalorder %s24, 0
      %p45 = por %p43, %p44
      %p46 = scmp.ne.s32.totalorder %s32, %s33
      %p47 = scmp.eq.s32.totalorder %s25, 1
      %p48 = por %p46, %p47
      %p50 = scmp.ne.s32.totalorder %s33, %s49
      %p51 = scmp.eq.s32.totalorder %s25, 0
      %p52 = por %p50, %p51
      %s54 = sadd.s32 %s53, 1
      %p57 = scmp.eq.s32.totalorder %s19, 1
      %p58 = scmp.ne.s32.totalorder %s53, %s55
      %p59 = scmp.eq.s32.totalorder %s19, 0
      %p60 = por %p58, %p59
      %p61 = scmp.ne.s32.totalorder %s53, %s55
      %p62 = scmp.eq.s32.totalorder %s24, 1
      %p63 = por %p61, %p62
      %p64 = scmp.ne.s32.totalorder %s55, %s56
      %p65 = scmp.eq.s32.totalorder %s24, 0
      %p66 = por %p64, %p65
      %p67 = scmp.ne.s32.totalorder %s55, %s56
      %p68 = scmp.eq.s32.totalorder %s25, 1
      %p69 = por %p67, %p68
      %p71 = scmp.ne.s32.totalorder %s56, %s70
      %p72 = scmp.eq.s32.totalorder %s25, 0
      %p73 = por %p71, %p72
      %s75 = sadd.s32 %s74, 1
      %p78 = scmp.eq.s32.totalorder %s19, 1
      %p79 = scmp.ne.s32.totalorder %s74, %s76
      %p80 = scmp.eq.s32.totalorder %s19, 0
      %p81 = por %p79, %p80
      %p82 = scmp.ne.s32.totalorder %s74, %s76
      %p83 = scmp.eq.s32.totalorder %s24, 1
      %p84 = por %p82, %p83
      %p85 = scmp.ne.s32.totalorder %s76, %s77
      %p86 = scmp.eq.s32.totalorder %s24, 0
      %p87 = por %p85, %p86
      %p88 = scmp.ne.s32.totalorder %s76, %s77
      %p89 = scmp.eq.s32.totalorder %s25, 1
      %p90 = por %p88, %p89
      %p92 = scmp.ne.s32.totalorder %s77, %s91
      %p93 = scmp.eq.s32.totalorder %s25, 0
      %p94 = por %p92, %p93
      %s96 = sadd.s32 %s95, 1
      %p99 = scmp.eq.s32.totalorder %s19, 1
      %p100 = scmp.ne.s32.totalorder %s95, %s97
      %p101 = scmp.eq.s32.totalorder %s19, 0
      %p102 = por %p100, %p101
      %p103 = scmp.ne.s32.totalorder %s95, %s97
      %p104 = scmp.eq.s32.totalorder %s24, 1
      %p105 = por %p103, %p104
      %p106 = scmp.ne.s32.totalorder %s97, %s98
      %p107 = scmp.eq.s32.totalorder %s24, 0
      %p108 = por %p106, %p107
      %p109 = scmp.ne.s32.totalorder %s97, %s98
      %p110 = scmp.eq.s32.totalorder %s25, 1
      %p111 = por %p109, %p110
      %p113 = scmp.ne.s32.totalorder %s98, %s112
      %p114 = scmp.eq.s32.totalorder %s25, 0
      %p115 = por %p113, %p114
      %s116 = ssub.s32 %s19, %s26
      %p117 = scmp.eq.s32.totalorder %s116, 0
      %s119 = sadd.s32 %s118, 1
      %s120 = scalar_select %p117, %s118, %s119
      %p123 = pneg %p117
      %p124 = scmp.eq.s32.totalorder %s19, 1
      %p125 = por %p123, %p124
      %p126 = scmp.ne.s32.totalorder %s118, %s121
      %p127 = scmp.eq.s32.totalorder %s19, 0
      %p128 = por %p126, %p127
      %p129 = scmp.ne.s32.totalorder %s118, %s121
      %p130 = scmp.eq.s32.totalorder %s24, 1
      %p131 = por %p129, %p130
      %p132 = scmp.ne.s32.totalorder %s121, %s122
      %p133 = scmp.eq.s32.totalorder %s24, 0
      %p134 = por %p132, %p133
      %p135 = scmp.ne.s32.totalorder %s121, %s122
      %p136 = scmp.eq.s32.totalorder %s25, 1
      %p137 = por %p135, %p136
      %p139 = scmp.ne.s32.totalorder %s122, %s138
      %p140 = scmp.eq.s32.totalorder %s25, 0
      %p141 = por %p139, %p140
      %p142 = scmp.le.s32.totalorder 1, %s19
      %p143 = scmp.lt.s32.totalorder %s19, 3
      %p144 = pnand %p142, %p143
      %p145 = pneg %p144
      // Predicated region
      $region9: #{tpu_custom_call.1} parent=5 // pred_check
        _
      $region10: #{tpu_custom_call.1} parent=5 // pred_check_branch
        %147 = sbr.rel (%p144) target = $region12
      $region11: #{tpu_custom_call.1} parent=5 // pred_region
        %s148 = ssub.s32 %s19, 1
        // Predicated region
        $region13: #{tpu_custom_call.1} parent=11 // pred_check
          %p149 = pneg %p66
        $region14: #{tpu_custom_call.1} parent=11 // pred_check_branch
          %151 = sbr.rel (%p149) target = $region16
        $region15: #{tpu_custom_call.1} parent=11 // pred_region
          %153 = vsyncadd [#allocation5], 0
          %s155 = sshll.u32 %s1, 4
          %s156 = int_to_ptr.hbm [resolvable:$true] %s155
          %158 = dma.hbm_to_smem %s156, 16, [#allocation7], [#allocation5]
        $region16: #{tpu_custom_call.1} parent=11 // pred_fallthru
          _
        // Predicated region
        $region17: #{tpu_custom_call.1} parent=11 // pred_check
          %p159 = pneg %p87
        $region18: #{tpu_custom_call.1} parent=11 // pred_check_branch
          %161 = sbr.rel (%p159) target = $region20
        $region19: #{tpu_custom_call.1} parent=11 // pred_region
          %163 = vsyncadd [#allocation6], 0
          %s165 = sshll.u32 %s2, 4
          %s166 = int_to_ptr.vmem [resolvable:$true] %s165
          %168 = dma.vmem_to_smem %s166, 16, [#allocation8], [#allocation6]
        $region20: #{tpu_custom_call.1} parent=11 // pred_fallthru
          _
        // Predicated region
        $region21: #{tpu_custom_call.1} parent=11 // pred_check
          %p169 = pneg %p108
        $region22: #{tpu_custom_call.1} parent=11 // pred_check_branch
          %171 = sbr.rel (%p169) target = $region24
        $region23: #{tpu_custom_call.1} parent=11 // pred_region
          %173 = vsyncadd [#allocation10], 0
          %s175 = sshll.u32 %s3, 4
          %s176 = int_to_ptr.vmem [resolvable:$true] %s175
          %178 = dma.vmem_to_smem %s176, 16, [#allocation9], [#allocation10]
        $region24: #{tpu_custom_call.1} parent=11 // pred_fallthru
          _
      $region12: #{tpu_custom_call.1} parent=5 // pred_fallthru
        _
      %p179 = scmp.lt.s32.totalorder %s19, 2
      // Predicated region
      $region25: #{tpu_custom_call.1} parent=5 // pred_check
        %p180 = pneg %p179
      $region26: #{tpu_custom_call.1} parent=5 // pred_check_branch
        %182 = sbr.rel (%p180) target = $region28
      $region27: #{tpu_custom_call.1} parent=5 // pred_region
        // Predicated region
        $region29: #{tpu_custom_call.1} parent=27 // pred_check
          %p183 = pneg %p39
        $region30: #{tpu_custom_call.1} parent=27 // pred_check_branch
          %185 = sbr.rel (%p183) target = $region32
        $region31: #{tpu_custom_call.1} parent=27 // pred_region
          %s186 = sand.u32 %s29, 1
          %s187 = scalar_lea.sflag [#allocation3], %s186
          %s188 = sand.u32 %s29, 1
          %s189 = smul.addr %s188, 8
          %s190 = scalar_lea.vmem [#allocation2], %s189
          %192 = vsyncadd %s187, 0
          %s193 = smul.addr %s19, 2
          %s194 = smul.addr %s193, 4
          %s195 = scalar_lea.hbm %s0, %s194
          %s197 = sshll.u32 %s195, 4
          %s198 = int_to_ptr.hbm [resolvable:$true] %s197
          %s199 = sshll.u32 %s190, 4
          %s200 = int_to_ptr.vmem [resolvable:$true] %s199
          %202 = dma.hbm_to_vmem [thread:$0]  %s198, 128, %s200, %s187
        $region32: #{tpu_custom_call.1} parent=27 // pred_fallthru
          _
      $region28: #{tpu_custom_call.1} parent=5 // pred_fallthru
        _
      %p203 = scmp.le.s32.totalorder 1, %s19
      %p204 = scmp.lt.s32.totalorder %s19, 3
      %p205 = pnand %p203, %p204
      %p206 = pneg %p205
      // Predicated region
      $region33: #{tpu_custom_call.1} parent=5 // pred_check
        _
      $region34: #{tpu_custom_call.1} parent=5 // pred_check_branch
        %208 = sbr.rel (%p205) target = $region36
      $region35: #{tpu_custom_call.1} parent=5 // pred_region
        %s209 = ssub.s32 %s19, 1
        %s210 = sand.u32 %s32, 1
        %s211 = scalar_lea.sflag [#allocation3], %s210
        %s212 = sand.u32 %s32, 1
        %s213 = smul.addr %s212, 8
        %s214 = scalar_lea.vmem [#allocation2], %s213
        // Predicated region
        $region37: #{tpu_custom_call.1} parent=35 // pred_check
          %p215 = pneg %p45
        $region38: #{tpu_custom_call.1} parent=35 // pred_check_branch
          %217 = sbr.rel (%p215) target = $region40
        $region39: #{tpu_custom_call.1} parent=35 // pred_region
          %219 = dma.done %s211, 128
        $region40: #{tpu_custom_call.1} parent=35 // pred_fallthru
          _
        // Predicated region
        $region41: #{tpu_custom_call.1} parent=35 // pred_check
          %p220 = pneg %p66
        $region42: #{tpu_custom_call.1} parent=35 // pred_check_branch
          %222 = sbr.rel (%p220) target = $region44
        $region43: #{tpu_custom_call.1} parent=35 // pred_region
          %224 = dma.done [#allocation5], 16
        $region44: #{tpu_custom_call.1} parent=35 // pred_fallthru
          _
        // Predicated region
        $region45: #{tpu_custom_call.1} parent=35 // pred_check
          %p225 = pneg %p87
        $region46: #{tpu_custom_call.1} parent=35 // pred_check_branch
          %227 = sbr.rel (%p225) target = $region48
        $region47: #{tpu_custom_call.1} parent=35 // pred_region
          %229 = dma.done [#allocation6], 16
        $region48: #{tpu_custom_call.1} parent=35 // pred_fallthru
          _
        // Predicated region
        $region49: #{tpu_custom_call.1} parent=35 // pred_check
          %p230 = pneg %p108
        $region50: #{tpu_custom_call.1} parent=35 // pred_check_branch
          %232 = sbr.rel (%p230) target = $region52
        $region51: #{tpu_custom_call.1} parent=35 // pred_region
          %234 = dma.done [#allocation10], 16
        $region52: #{tpu_custom_call.1} parent=35 // pred_fallthru
          _
        %235 = sfence
        %s236 = sand.u32 %s32, 1
        %s237 = scalar_lea.sflag [#allocation3], %s236
        %s238 = sand.u32 %s32, 1
        %s239 = smul.addr %s238, 8
        %s240 = scalar_lea.vmem [#allocation2], %s239
        %p241 = pneg %p45
        %p242 = pneg %p42
        %p243 = pneg %p66
        %p244 = pneg %p63
        %p245 = pneg %p87
        %p246 = pneg %p84
        %p247 = pneg %p108
        %p248 = pneg %p105
        %p249 = pneg %p134
        %p250 = pneg %p131
        %s251 = sand.u32 %s121, 1
        %s252 = scalar_lea.sflag [#allocation4], %s251
        %s253 = sand.u32 %s121, 1
        %s254 = smul.addr %s253, 8
        %s255 = scalar_lea.vmem [#allocation11], %s254
        %v256 = vld [vmem:[%s214] sm:$0xff]
        %s257 = sld [smem:[#allocation9]]
        %s258 = sld [smem:[#allocation9 + $0x1]]
        %s259 = sld [smem:[#allocation7]]
        %v260 = vstv %s259
        %v261 = vmul.f32 %v256, %v260
        %s262 = sld [smem:[#allocation8]]
        %v263 = vstv %s262
        %v264 = vadd.f32 %v261, %v263
        %s265 = sld [smem:[#allocation7 + $0x1]]
        %v266 = vstv %s265
        %v267 = vmul.f32 %v256, %v266
        %v269 = vrot.slane %v267, 5
        %v270 = vrot.slane %v269, 4
        %v272 = vadd.f32 %v264, %v270
        %s273 = sld [smem:[#allocation7 + $0x2]]
        %v274 = vstv %s273
        %v275 = vmul.f32 %v256, %v274
        %v277 = vrot.slane %v275, 6
        %v278 = vrot.slane %v277, 4
        %v280 = vadd.f32 %v272, %v278
        %s281 = sld [smem:[#allocation7 + $0x3]]
        %v282 = vstv %s281
        %v283 = vmul.f32 %v256, %v282
        %v285 = vrot.slane %v283, 7
        %v286 = vrot.slane %v285, 4
        %v288 = vadd.f32 %v280, %v286
        %vm289 = vcmp.ge.f32.partialorder %v288, 0.0
        %v290 = vstv %s257
        %v291 = vmul.f32 %v290, %v288
        %v292 = vsel %vm289, %v288, %v291
        %vm293 = vcmp.ge.f32.partialorder %v292, 0.0
        %v294 = vstv %s258
        %v295 = vmul.f32 %v294, %v292
        %v296 = vsel %vm293, %v292, %v295
        %v298 = vrot.slane %v296, 3
        %vm299 = vcmask 1040384
        %v300 = vsel %vm299, %v296, %v298
        %v302 = vlaneseq
        %vm303 = vcmp.ge.s32.totalorder %v302, 0
        %vm304 = vcmp.lt.s32.totalorder %v302, 256
        %vm305 = vmand %vm303, %vm304
        %306 = vst.msk [vmem:[%s255] ss:$4 sm:$0x3] %vm305, %v300
        %s307 = sld [smem:[#allocation7 + $0x4]]
        %v308 = vstv %s307
        %v309 = vmul.f32 %v256, %v308
        %s310 = sld [smem:[#allocation8 + $0x1]]
        %v311 = vstv %s310
        %v312 = vadd.f32 %v309, %v311
        %s313 = sld [smem:[#allocation7 + $0x5]]
        %v314 = vstv %s313
        %v315 = vmul.f32 %v256, %v314
        %v317 = vrot.slane %v315, 5
        %v318 = vrot.slane %v317, 4
        %v320 = vadd.f32 %v312, %v318
        %s321 = sld [smem:[#allocation7 + $0x6]]
        %v322 = vstv %s321
        %v323 = vmul.f32 %v256, %v322
        %v325 = vrot.slane %v323, 6
        %v326 = vrot.slane %v325, 4
        %v328 = vadd.f32 %v320, %v326
        %s329 = sld [smem:[#allocation7 + $0x7]]
        %v330 = vstv %s329
        %v331 = vmul.f32 %v256, %v330
        %v333 = vrot.slane %v331, 7
        %v334 = vrot.slane %v333, 4
        %v336 = vadd.f32 %v328, %v334
        %vm337 = vcmp.ge.f32.partialorder %v336, 0.0
        %v338 = vmul.f32 %v290, %v336
        %v339 = vsel %vm337, %v336, %v338
        %vm340 = vcmp.ge.f32.partialorder %v339, 0.0
        %v341 = vmul.f32 %v294, %v339
        %v342 = vsel %vm340, %v339, %v341
        %v344 = vrot.slane %v342, 3
        %v345 = vsel %vm299, %v342, %v344
        %s347 = scalar_lea.vmem %s255, 1 [#allocation11]
        %348 = vst.msk [vmem:[%s347] ss:$4 sm:$0x3] %vm305, %v345
        %s349 = sld [smem:[#allocation7 + $0x8]]
        %v350 = vstv %s349
        %v351 = vmul.f32 %v256, %v350
        %s352 = sld [smem:[#allocation8 + $0x2]]
        %v353 = vstv %s352
        %v354 = vadd.f32 %v351, %v353
        %s355 = sld [smem:[#allocation7 + $0x9]]
        %v356 = vstv %s355
        %v357 = vmul.f32 %v256, %v356
        %v359 = vrot.slane %v357, 5
        %v360 = vrot.slane %v359, 4
        %v362 = vadd.f32 %v354, %v360
        %s363 = sld [smem:[#allocation7 + $0xa]]
        %v364 = vstv %s363
        %v365 = vmul.f32 %v256, %v364
        %v367 = vrot.slane %v365, 6
        %v368 = vrot.slane %v367, 4
        %v370 = vadd.f32 %v362, %v368
        %s371 = sld [smem:[#allocation7 + $0xb]]
        %v372 = vstv %s371
        %v373 = vmul.f32 %v256, %v372
        %v375 = vrot.slane %v373, 7
        %v376 = vrot.slane %v375, 4
        %v378 = vadd.f32 %v370, %v376
        %vm379 = vcmp.ge.f32.partialorder %v378, 0.0
        %v380 = vmul.f32 %v290, %v378
        %v381 = vsel %vm379, %v378, %v380
        %vm382 = vcmp.ge.f32.partialorder %v381, 0.0
        %v383 = vmul.f32 %v294, %v381
        %v384 = vsel %vm382, %v381, %v383
        %v386 = vrot.slane %v384, 3
        %v387 = vsel %vm299, %v384, %v386
        %s389 = scalar_lea.vmem %s255, 2 [#allocation11]
        %390 = vst.msk [vmem:[%s389] ss:$4 sm:$0x3] %vm305, %v387
        %s391 = sld [smem:[#allocation7 + $0xc]]
        %v392 = vstv %s391
        %v393 = vmul.f32 %v256, %v392
        %s394 = sld [smem:[#allocation8 + $0x3]]
        %v395 = vstv %s394
        %v396 = vadd.f32 %v393, %v395
        %s397 = sld [smem:[#allocation7 + $0xd]]
        %v398 = vstv %s397
        %v399 = vmul.f32 %v256, %v398
        %v401 = vrot.slane %v399, 5
        %v402 = vrot.slane %v401, 4
        %v404 = vadd.f32 %v396, %v402
        %s405 = sld [smem:[#allocation7 + $0xe]]
        %v406 = vstv %s405
        %v407 = vmul.f32 %v256, %v406
        %v409 = vrot.slane %v407, 6
        %v410 = vrot.slane %v409, 4
        %v412 = vadd.f32 %v404, %v410
        %s413 = sld [smem:[#allocation7 + $0xf]]
        %v414 = vstv %s413
        %v415 = vmul.f32 %v256, %v414
        %v417 = vrot.slane %v415, 7
        %v418 = vrot.slane %v417, 4
        %v420 = vadd.f32 %v412, %v418
        %vm421 = vcmp.ge.f32.partialorder %v420, 0.0
        %v422 = vmul.f32 %v290, %v420
        %v423 = vsel %vm421, %v420, %v422
        %vm424 = vcmp.ge.f32.partialorder %v423, 0.0
        %v425 = vmul.f32 %v294, %v423
        %v426 = vsel %vm424, %v423, %v425
        %v428 = vrot.slane %v426, 3
        %v429 = vsel %vm299, %v426, %v428
        %s431 = scalar_lea.vmem %s255, 3 [#allocation11]
        %432 = vst.msk [vmem:[%s431] ss:$4 sm:$0x3] %vm305, %v429
        %s433 = sand.u32 %s121, 1
        %s434 = scalar_lea.sflag [#allocation4], %s433
        %s435 = sand.u32 %s121, 1
        %s436 = smul.addr %s435, 8
        %s437 = scalar_lea.vmem [#allocation11], %s436
        // Predicated region
        $region53: #{tpu_custom_call.1} parent=35 // pred_check
          %p438 = pneg %p131
        $region54: #{tpu_custom_call.1} parent=35 // pred_check_branch
          %440 = sbr.rel (%p438) target = $region56
        $region55: #{tpu_custom_call.1} parent=35 // pred_region
          %442 = vsyncadd %s434, 0
          %s443 = smul.addr %s24, 2
          %s444 = smul.addr %s443, 4
          %s445 = scalar_lea.hbm %s4, %s444
          %s447 = sshll.u32 %s437, 4
          %s448 = int_to_ptr.vmem [resolvable:$true] %s447
          %s449 = sshll.u32 %s445, 4
          %s450 = int_to_ptr.hbm [resolvable:$true] %s449
          %452 = dma.vmem_to_hbm [thread:$0]  %s448, 128, %s450, %s434
        $region56: #{tpu_custom_call.1} parent=35 // pred_fallthru
          _
      $region36: #{tpu_custom_call.1} parent=5 // pred_fallthru
        _
      %p453 = scmp.le.s32.totalorder 2, %s19
      // Predicated region
      $region57: #{tpu_custom_call.1} parent=5 // pred_check
        %p454 = pneg %p453
      $region58: #{tpu_custom_call.1} parent=5 // pred_check_branch
        %456 = sbr.rel (%p454) target = $region60
      $region59: #{tpu_custom_call.1} parent=5 // pred_region
        %s457 = ssub.s32 %s19, 2
        // Predicated region
        $region61: #{tpu_custom_call.1} parent=59 // pred_check
          %p458 = pneg %p137
        $region62: #{tpu_custom_call.1} parent=59 // pred_check_branch
          %460 = sbr.rel (%p458) target = $region64
        $region63: #{tpu_custom_call.1} parent=59 // pred_region
          %s461 = sand.u32 %s122, 1
          %s462 = scalar_lea.sflag [#allocation4], %s461
          %s463 = sand.u32 %s122, 1
          %s464 = smul.addr %s463, 8
          %s465 = scalar_lea.vmem [#allocation11], %s464
          %467 = dma.done %s462, 128
        $region64: #{tpu_custom_call.1} parent=59 // pred_fallthru
          _
      $region60: #{tpu_custom_call.1} parent=5 // pred_fallthru
        _
    $region6: #{tpu_custom_call.1} parent=1 // loop_footer
      %s23 = sadd.s32 1, %s19
    $region7: #{tpu_custom_call.1} parent=1 // loop_footer_branch
      %18 = sbr.rel target = $region3
    $region8: #{tpu_custom_call.1} parent=1 // loop_exit
      _
    %468 = vsyncpa [#allocation3], 1
    %s469 = scalar_lea.sflag [#allocation3], 1
    %470 = vsyncpa %s469, 1
    %471 = vsyncpa [#allocation4], 1
    %s472 = scalar_lea.sflag [#allocation4], 1
    %473 = vsyncpa %s472, 1
    %474 = vsyncpa [#allocation5], 1
    %s475 = scalar_lea.sflag [#allocation5], 1
    %476 = vsyncpa %s475, 1
    %477 = vsyncpa [#allocation6], 1
    %s478 = scalar_lea.sflag [#allocation6], 1
    %479 = vsyncpa %s478, 1
    %480 = vsyncpa [#allocation10], 1

</llo_original>
